<compile_context>
chip_gen: v6e
topology: v6e:2x2x1
jax: 0.10.0
libtpu: 0.0.40
codegen_flags: <defaults>
</compile_context>

<pallas_src>
import jax
import jax.numpy as jnp
from jax.experimental import pallas as pl
from jax.experimental.pallas import tpu as pltpu


def _round_up(x, m):
    return (x + m - 1) // m * m


def _embed_kernel(group_ref, patches_ref, w_ref, pos_ref, out_ref):
    # group_ref: (B,) int32 scalar-prefetch (consumed only by the index_maps).
    # patches_ref: (1, TS, Kp) bf16   w_ref: (Kp, D) bf16
    # pos_ref:     (1, TS, D) bf16    out_ref: (1, TS, D)
    del group_ref
    proj = jnp.dot(patches_ref[0], w_ref[...],
                   preferred_element_type=jnp.float32)            # (TS, D) f32 acc
    out_ref[0] = (proj + pos_ref[0].astype(jnp.float32)).astype(out_ref.dtype)


def _interp_pos_hwd(pos_hwd, out_h, out_w):
    """F.interpolate(mode='bilinear', align_corners=False) on a (gh, gw, D) map."""
    gh, gw, _ = pos_hwd.shape

    def src(out_size, in_size):
        o = jnp.arange(out_size, dtype=jnp.float32)
        s = (o + 0.5) * (in_size / out_size) - 0.5
        s = jnp.maximum(s, 0.0)                      # PyTorch clamps negative src to 0
        i0 = jnp.minimum(jnp.floor(s).astype(jnp.int32), in_size - 1)
        i1 = jnp.minimum(i0 + 1, in_size - 1)
        lam = s - i0.astype(jnp.float32)
        return i0, i1, lam

    y0, y1, ly = src(out_h, gh)
    x0, x1, lx = src(out_w, gw)
    top, bot = pos_hwd[y0], pos_hwd[y1]                          # (out_h, gw, D)
    rows = top * (1.0 - ly)[:, None, None] + bot * ly[:, None, None]
    left, right = rows[:, x0], rows[:, x1]                       # (out_h, out_w, D)
    return left * (1.0 - lx)[None, :, None] + right * lx[None, :, None]


def vision_embeddings_forward(images, sizes, params, patch_size,
                              out_dtype=jnp.bfloat16):
    """images: (B, C, H, W) float32 (padded batch); sizes: list of (Hi, Wi)."""
    w_conv = params["patch_embedding"]          # (D, C, P, P)
    cls_emb = params["class_embedding"]         # (D,)
    patch_pos = params["patch_pos_embedding"]   # (D, gh, gw)
    cls_pos = params["class_pos_embedding"]     # (D,)

    B, C, H, W = images.shape
    D = w_conv.shape[0]
    P = patch_size
    Hp, Wp = H // P, W // P
    N = Hp * Wp
    S = 1 + N
    K = C * P * P
    Kp = _round_up(K, 128)

    # ---- glue: im2col (bf16; XLA may fuse this producer into the input DMA) ----
    patches = images.astype(jnp.bfloat16)
    patches = patches.reshape(B, C, Hp, P, Wp, P).transpose(0, 2, 4, 1, 3, 5)
    patches = patches.reshape(B, N, K)
    # Prepend one zero row (class-token slot -> matmul yields 0) and pad K to 128x.
    patches = jnp.pad(patches, ((0, 0), (1, 0), (0, Kp - K)))            # (B, S, Kp)
    w_mat = jnp.pad(w_conv.reshape(D, K).T.astype(jnp.bfloat16),
                    ((0, Kp - K), (0, 0)))                               # (Kp, D)

    # ---- glue: positional table, deduped by unique post-conv size, bf16 ----
    # TODO(synk): the bilinear interpolation is a tiny data-dependent gather;
    # kept as JAX glue rather than in-kernel.
    new_sizes = [((Hi - P) // P + 1, (Wi - P) // P + 1) for (Hi, Wi) in sizes]
    uniq, group_ids = [], []
    for hw in new_sizes:
        if hw not in uniq:
            uniq.append(hw)
        group_ids.append(uniq.index(hw))
    group_ids = jnp.asarray(group_ids, jnp.int32)
    G = len(uniq)

    pos_hwd = patch_pos.transpose(1, 2, 0).astype(jnp.float32)           # (gh, gw, D)
    cls_row = (cls_emb + cls_pos).astype(jnp.float32)[None, :]           # class folded in
    blocks = []
    for (h, w) in uniq:
        canvas = jnp.zeros((Hp, Wp, D), jnp.float32)
        canvas = canvas.at[:h, :w].set(_interp_pos_hwd(pos_hwd, h, w))
        blocks.append(jnp.concatenate([cls_row, canvas.reshape(N, D)], axis=0))
    pos_table = jnp.stack(blocks, axis=0).astype(jnp.bfloat16)           # (G, S, D)

    # ---- seq tiling: balanced tiles <= 512 rows; expose >=2 grid units (2 TCs) ----
    MAX_TS = 512
    n_seq = pl.cdiv(S, MAX_TS)
    if B * n_seq < 2 and S >= 16:
        n_seq = 2                                    # keep both v7x TensorCores busy
    TS = S if n_seq == 1 else _round_up(pl.cdiv(S, n_seq), 8)

    out_itemsize = jnp.dtype(out_dtype).itemsize
    cost = pl.CostEstimate(
        flops=2 * B * S * Kp * D,
        transcendentals=0,
        bytes_accessed=(B * S * Kp * 2 + Kp * D * 2
                        + G * S * D * 2 + B * S * D * out_itemsize),
    )

    out = pl.pallas_call(
        _embed_kernel,
        out_shape=jax.ShapeDtypeStruct((B, S, D), out_dtype),
        grid_spec=pltpu.PrefetchScalarGridSpec(
            num_scalar_prefetch=1,
            grid=(n_seq, B),        # batch innermost: pos block reused across b
            in_specs=[
                pl.BlockSpec((1, TS, Kp), lambda s, b, grp: (b, s, 0)),
                pl.BlockSpec((Kp, D), lambda s, b, grp: (0, 0)),
                pl.BlockSpec((1, TS, D), lambda s, b, grp: (grp[b], s, 0)),
            ],
            out_specs=pl.BlockSpec((1, TS, D), lambda s, b, grp: (b, s, 0)),
        ),
        compiler_params=pltpu.CompilerParams(
            dimension_semantics=("parallel", "parallel"),
            # [group_ids, patches, w_mat, pos_table]: let XLA fuse the im2col
            # producer of `patches` into the kernel's input pipeline.
            allow_input_fusion=[False, True, False, False],
        ),
        cost_estimate=cost,
    )(group_ids, patches, w_mat, pos_table)

    seq_lens = [1 + h * w for h, w in new_sizes]   # Batched2DTensors sizes
    return out, new_sizes, seq_lens


if __name__ == "__main__":
    key = jax.random.PRNGKey(0)

    # small synthetic config: image 16x16, patch 8 -> pretrained grid 2x2,
    # hidden D=32, channels C=4, batch B=2 with ragged sizes.
    B, C, H, W = 2, 4, 16, 16
    P, D = 8, 32
    gh = gw = 2
    num_positions = gh * gw + 1

    k1, k2, k3, k4 = jax.random.split(key, 4)
    params = {
        "patch_embedding": 0.02 * jax.random.normal(k1, (D, C, P, P), jnp.float32),
        "class_embedding": 0.02 * jax.random.normal(k2, (D,), jnp.float32),
    }
    pos_weight = 0.02 * jax.random.normal(k3, (num_positions, D), jnp.float32)
    params["class_pos_embedding"] = pos_weight[0]
    params["patch_pos_embedding"] = pos_weight[1:].reshape(gh, gw, D).transpose(2, 0, 1)

    sizes = [(16, 16), (16, 8)]          # second image is narrower (ragged batch)
    images = jax.random.normal(k4, (B, C, H, W), jnp.float32)
    mask = jnp.ones((B, 1, H, W), jnp.float32)
    mask = mask.at[1, :, :, sizes[1][1]:].set(0.0)   # Batched3DTensors zero padding
    images = images * mask

    out, new_sizes, seq_lens = vision_embeddings_forward(images, sizes, params, P)
    out = jax.block_until_ready(out)

    # pure-JAX f32 reference of the same math (loose tol: bf16 operands + bf16 out)
    Hp, Wp = H // P, W // P
    N, K = Hp * Wp, C * P * P
    patches_ref = images.reshape(B, C, Hp, P, Wp, P).transpose(0, 2, 4, 1, 3, 5)
    patches_ref = patches_ref.reshape(B, N, K)
    proj_ref = jnp.einsum("bnk,kd->bnd", patches_ref,
                          params["patch_embedding"].reshape(D, K).T,
                          precision=jax.lax.Precision.HIGHEST)
    pos_hwd_ref = params["patch_pos_embedding"].transpose(1, 2, 0)
    pos_rows = jnp.zeros((B, N, D), jnp.float32)
    for idx, (h, w) in enumerate(new_sizes):
        canvas = jnp.zeros((Hp, Wp, D), jnp.float32)
        canvas = canvas.at[:h, :w].set(_interp_pos_hwd(pos_hwd_ref, h, w))
        pos_rows = pos_rows.at[idx].set(canvas.reshape(N, D))
    cls_ref_row = params["class_embedding"] + params["class_pos_embedding"]
    ref = jnp.concatenate(
        [jnp.broadcast_to(cls_ref_row[None, None, :], (B, 1, D)),
         proj_ref + pos_rows], axis=1)

    assert out.shape == (B, 1 + N, D)
    assert new_sizes == [(2, 2), (2, 1)] and seq_lens == [5, 3]
    assert jnp.allclose(out.astype(jnp.float32), ref, rtol=2e-2, atol=2e-2), \
        "mismatch vs reference"

    print("KERNEL_OK")
</pallas_src>

<mosaic_0001>
module attributes {stable_mosaic.version = 11 : i64} {
  func.func @_embed_kernel(%arg0: i32, %arg1: i32, %arg2: memref<2xi32, #tpu.memory_space<smem>>, %arg3: memref<1x5x256xbf16, #tpu.memory_space<vmem>>, %arg4: memref<256x32xbf16, #tpu.memory_space<vmem>>, %arg5: memref<1x5x32xbf16, #tpu.memory_space<vmem>>, %arg6: memref<1x5x32xbf16, #tpu.memory_space<vmem>>) attributes {dimension_semantics = [#tpu.dimension_semantics<parallel>, #tpu.dimension_semantics<parallel>], iteration_bounds = array<i64: 1, 2>, scalar_prefetch = 1 : i64, scratch_operands = 0 : i64, tpu.core_type = #tpu.core_type<tc>, window_params = [{transform_indices = @transform_0, window_bounds = array<i64: 1, 5, 256>}, {pipeline_mode = #tpu.pipeline_mode<synchronous>, transform_indices = @transform_1, window_bounds = array<i64: 256, 32>}, {transform_indices = @transform_2, window_bounds = array<i64: 1, 5, 32>}, {transform_indices = @transform_3, window_bounds = array<i64: 1, 5, 32>}]} {
    %c0 = arith.constant 0 : index
    %c0_0 = arith.constant 0 : index
    %c0_1 = arith.constant 0 : index
    %0 = vector.load %arg3[%c0, %c0_0, %c0_1] : memref<1x5x256xbf16, #tpu.memory_space<vmem>>, vector<1x5x256xbf16>
    %1 = vector.shape_cast %0 : vector<1x5x256xbf16> to vector<5x256xbf16>
    %c0_2 = arith.constant 0 : index
    %c0_3 = arith.constant 0 : index
    %2 = vector.load %arg4[%c0_2, %c0_3] : memref<256x32xbf16, #tpu.memory_space<vmem>>, vector<256x32xbf16>
    %cst = arith.constant dense<0.000000e+00> : vector<5x32xf32>
    %3 = tpu.matmul %1, %2, %cst {dimension_numbers = #tpu.dot_dimension_numbers<[1], [0], [0], [1], [0, 0, 1, 1], [], []>} : vector<5x256xbf16>, vector<256x32xbf16>, vector<5x32xf32> -> vector<5x32xf32>
    %c0_4 = arith.constant 0 : index
    %c0_5 = arith.constant 0 : index
    %c0_6 = arith.constant 0 : index
    %4 = vector.load %arg5[%c0_4, %c0_5, %c0_6] : memref<1x5x32xbf16, #tpu.memory_space<vmem>>, vector<1x5x32xbf16>
    %5 = vector.shape_cast %4 : vector<1x5x32xbf16> to vector<5x32xbf16>
    %6 = arith.extf %5 : vector<5x32xbf16> to vector<5x32xf32>
    %7 = arith.addf %3, %6 : vector<5x32xf32>
    %8 = arith.truncf %7 : vector<5x32xf32> to vector<5x32xbf16>
    %c0_7 = arith.constant 0 : index
    %c0_8 = arith.constant 0 : index
    %c0_9 = arith.constant 0 : index
    %9 = vector.load %arg6[%c0_7, %c0_8, %c0_9] : memref<1x5x32xbf16, #tpu.memory_space<vmem>>, vector<1x5x32xbf16>
    %10 = vector.shape_cast %9 : vector<1x5x32xbf16> to vector<5x32xbf16>
    %11 = vector.shape_cast %8 : vector<5x32xbf16> to vector<1x5x32xbf16>
    tpu.vector_store %arg6[%c0_7, %c0_8, %c0_9], %11 {strides = array<i32>} : memref<1x5x32xbf16, #tpu.memory_space<vmem>>, vector<1x5x32xbf16>,
    return
  }
  func.func @transform_0(%arg0: i32, %arg1: i32, %arg2: memref<2xi32, #tpu.memory_space<smem>>) -> (i32, i32, i32) {
    %c0_i32 = arith.constant 0 : i32
    %c0_i32_0 = arith.constant 0 : i32
    return %arg1, %arg0, %c0_i32 : i32, i32, i32
  }
  func.func @transform_1(%arg0: i32, %arg1: i32, %arg2: memref<2xi32, #tpu.memory_space<smem>>) -> (i32, i32) {
    %c0_i32 = arith.constant 0 : i32
    %c0_i32_0 = arith.constant 0 : i32
    %c0_i32_1 = arith.constant 0 : i32
    return %c0_i32, %c0_i32_0 : i32, i32
  }
  func.func @transform_2(%arg0: i32, %arg1: i32, %arg2: memref<2xi32, #tpu.memory_space<smem>>) -> (i32, i32, i32) {
    %0 = arith.index_cast %arg1 : i32 to index
    %1 = memref.load %arg2[%0] : memref<2xi32, #tpu.memory_space<smem>>
    %c0_i32 = arith.constant 0 : i32
    %c0_i32_0 = arith.constant 0 : i32
    return %1, %arg0, %c0_i32 : i32, i32, i32
  }
  func.func @transform_3(%arg0: i32, %arg1: i32, %arg2: memref<2xi32, #tpu.memory_space<smem>>) -> (i32, i32, i32) {
    %c0_i32 = arith.constant 0 : i32
    %c0_i32_0 = arith.constant 0 : i32
    return %arg1, %arg0, %c0_i32 : i32, i32, i32
  }
}

</mosaic_0001>

<llo_original>
// kernel: tpu_custom_call.1
$region0: #{tpu_custom_call.1}
  #allocation0 [shape = 'u32[]', space=smem, size = 0x4, offset = 0x4, fixed_abs, tag = 'smem constant byte address 0x4 - core index']
  #allocation1 [shape = 'u32[144,128]{1,0:T(1,128)}', space=vmem, size = 0x12000, scoped, tag = 'internal scratch']
  #allocation2 [shape = 's32[1]{0}', space=sflag, size = 0x4, scoped, tag = 'scoped memory for tpu_custom_call.1']
  #allocation3 [shape = 'u8[512]{0}', space=smem, size = 0x200, scoped, tag = 'prefetched SMEM operand 0']
  %s0 = inlined_call_operand.vmem [shape: s32[2], index: 0, kind: input, shape index: {}]
  %s1 = inlined_call_operand.vmem [shape: bf16[2,5,256], index: 1, kind: input, shape index: {}]
  %s2 = inlined_call_operand.vmem [shape: bf16[256,32], index: 2, kind: input, shape index: {}]
  %s3 = inlined_call_operand.vmem [shape: bf16[2,5,32], index: 3, kind: input, shape index: {}]
  %s4 = inlined_call_operand.vmem [shape: bf16[2,5,32], index: 4, kind: output, shape index: {}]
  %s5 = sld [smem:[#allocation0]]
  $region45: #{tpu_custom_call.1} parent=0
    _
  %s7 = ssub.s32 1, %s5
  %s8 = scalar_select 0, %s7, %s5
  %s9 = sshll.u32 %s0, 4
  %s10 = int_to_ptr.vmem [resolvable:$true] %s9
  %12 = dma.vmem_to_smem %s10, 16, [#allocation3], [#allocation2]
  %13 = dma.done [#allocation2], 16
  %14 = sfence
  loop: start=0, step=1, limit=4
  $region2: #{tpu_custom_call.1} parent=0 // loop_pre_header
    _
  $region3: #{tpu_custom_call.1} parent=0 // loop_header
    %s16 = sphi 0, %s20
    %p17 = scmp.ge.s32.totalorder %s16, 4
    %s23 = sphi 0, %s35
    %s24 = sphi 0, %s31
    %s25 = sphi 0, %s23
    %s26 = sphi 0, %s24
    %s27 = sphi 0, %s25
    %s28 = sphi 0, %s26
    %s40 = sphi 0, %s42
    %s43 = sphi 0, %s40
    %s44 = sphi 0, %s43
    %s60 = sphi 0, %s44
    %s64 = sphi 0, %s64
    %s66 = sphi 0, %s64
    %s67 = sphi 0, %s66
    %s81 = sphi 0, %s67
    %s91 = sphi 0, %s93
    %s94 = sphi 0, %s91
    %s95 = sphi 0, %s94
    %s111 = sphi 0, %s95
    %s119 = sphi 0, %s121
    %s122 = sphi 0, %s119
    %s123 = sphi 0, %s122
    %s139 = sphi 0, %s123
  $region4: #{tpu_custom_call.1} parent=0 // loop_header_branch
    %19 = sbr.rel (%p17) target = $region8
  $region5: #{tpu_custom_call.1} parent=0 // loop_body
    %s21 = ssub.s32 %s16, 1
    %s22 = ssub.s32 %s16, 2
    %s29 = sadd.s32 1, %s24
    %p30 = scmp.ge.s32.totalorder %s29, 2
    %s31 = scalar_select %p30, 0, %s29
    %s32 = sadd.s32 1, %s23
    %s33 = scalar_select %p30, %s32, %s23
    %p34 = scmp.ge.s32.totalorder %s33, 1
    %s35 = scalar_select %p34, 0, %s33
    %s36 = ssub.s32 %s24, %s31
    %s37 = ssub.s32 %s23, %s35
    %s38 = sor.u32 %s36, %s37
    %p39 = scmp.eq.s32.totalorder %s38, 0
    %s41 = sadd.s32 %s40, 1
    %s42 = scalar_select %p39, %s40, %s41
    %p45 = pneg %p39
    %p46 = scmp.eq.s32.totalorder %s16, 1
    %p47 = por %p45, %p46
    %p48 = scmp.ne.s32.totalorder %s40, %s43
    %p49 = scmp.eq.s32.totalorder %s16, 0
    %p50 = por %p48, %p49
    %p51 = scmp.ne.s32.totalorder %s40, %s43
    %p52 = scmp.eq.s32.totalorder %s21, 1
    %p53 = por %p51, %p52
    %p54 = scmp.ne.s32.totalorder %s43, %s44
    %p55 = scmp.eq.s32.totalorder %s21, 0
    %p56 = por %p54, %p55
    %p57 = scmp.ne.s32.totalorder %s43, %s44
    %p58 = scmp.eq.s32.totalorder %s22, 1
    %p59 = por %p57, %p58
    %p61 = scmp.ne.s32.totalorder %s44, %s60
    %p62 = scmp.eq.s32.totalorder %s22, 0
    %p63 = por %p61, %p62
    %s65 = sadd.s32 %s64, 1
    %p68 = scmp.eq.s32.totalorder %s16, 1
    %p69 = scmp.ne.s32.totalorder %s64, %s66
    %p70 = scmp.eq.s32.totalorder %s16, 0
    %p71 = por %p69, %p70
    %p72 = scmp.ne.s32.totalorder %s64, %s66
    %p73 = scmp.eq.s32.totalorder %s21, 1
    %p74 = por %p72, %p73
    %p75 = scmp.ne.s32.totalorder %s66, %s67
    %p76 = scmp.eq.s32.totalorder %s21, 0
    %p77 = por %p75, %p76
    %p78 = scmp.ne.s32.totalorder %s66, %s67
    %p79 = scmp.eq.s32.totalorder %s22, 1
    %p80 = por %p78, %p79
    %p82 = scmp.ne.s32.totalorder %s67, %s81
    %p83 = scmp.eq.s32.totalorder %s22, 0
    %p84 = por %p82, %p83
    %s85 = sld [smem:[#allocation3 + %s24]]
    %s86 = sld [smem:[#allocation3 + %s31]]
    %s87 = ssub.s32 %s85, %s86
    %s88 = ssub.s32 %s23, %s35
    %s89 = sor.u32 %s87, %s88
    %p90 = scmp.eq.s32.totalorder %s89, 0
    %s92 = sadd.s32 %s91, 1
    %s93 = scalar_select %p90, %s91, %s92
    %p96 = pneg %p90
    %p97 = scmp.eq.s32.totalorder %s16, 1
    %p98 = por %p96, %p97
    %p99 = scmp.ne.s32.totalorder %s91, %s94
    %p100 = scmp.eq.s32.totalorder %s16, 0
    %p101 = por %p99, %p100
    %p102 = scmp.ne.s32.totalorder %s91, %s94
    %p103 = scmp.eq.s32.totalorder %s21, 1
    %p104 = por %p102, %p103
    %p105 = scmp.ne.s32.totalorder %s94, %s95
    %p106 = scmp.eq.s32.totalorder %s21, 0
    %p107 = por %p105, %p106
    %p108 = scmp.ne.s32.totalorder %s94, %s95
    %p109 = scmp.eq.s32.totalorder %s22, 1
    %p110 = por %p108, %p109
    %p112 = scmp.ne.s32.totalorder %s95, %s111
    %p113 = scmp.eq.s32.totalorder %s22, 0
    %p114 = por %p112, %p113
    %s115 = ssub.s32 %s24, %s31
    %s116 = ssub.s32 %s23, %s35
    %s117 = sor.u32 %s115, %s116
    %p118 = scmp.eq.s32.totalorder %s117, 0
    %s120 = sadd.s32 %s119, 1
    %s121 = scalar_select %p118, %s119, %s120
    %p124 = pneg %p118
    %p125 = scmp.eq.s32.totalorder %s16, 1
    %p126 = por %p124, %p125
    %p127 = scmp.ne.s32.totalorder %s119, %s122
    %p128 = scmp.eq.s32.totalorder %s16, 0
    %p129 = por %p127, %p128
    %p130 = scmp.ne.s32.totalorder %s119, %s122
    %p131 = scmp.eq.s32.totalorder %s21, 1
    %p132 = por %p130, %p131
    %p133 = scmp.ne.s32.totalorder %s122, %s123
    %p134 = scmp.eq.s32.totalorder %s21, 0
    %p135 = por %p133, %p134
    %p136 = scmp.ne.s32.totalorder %s122, %s123
    %p137 = scmp.eq.s32.totalorder %s22, 1
    %p138 = por %p136, %p137
    %p140 = scmp.ne.s32.totalorder %s123, %s139
    %p141 = scmp.eq.s32.totalorder %s22, 0
    %p142 = por %p140, %p141
    %p143 = scmp.le.s32.totalorder 1, %s16
    %p144 = scmp.lt.s32.totalorder %s16, 3
    %p145 = pnand %p143, %p144
    %p146 = pneg %p145
    // Predicated region
    $region9: #{tpu_custom_call.1} parent=5 // pred_check
      _
    $region10: #{tpu_custom_call.1} parent=5 // pred_check_branch
      %148 = sbr.rel (%p145) target = $region12
    $region11: #{tpu_custom_call.1} parent=5 // pred_region
      %s149 = ssub.s32 %s16, 1
      // Predicated region
      $region13: #{tpu_custom_call.1} parent=11 // pred_check
        %p150 = pneg %p77
      $region14: #{tpu_custom_call.1} parent=11 // pred_check_branch
        %152 = sbr.rel (%p150) target = $region16
      $region15: #{tpu_custom_call.1} parent=11 // pred_region
        _
      $region16: #{tpu_custom_call.1} parent=11 // pred_fallthru
        _
    $region12: #{tpu_custom_call.1} parent=5 // pred_fallthru
      _
    %p153 = scmp.lt.s32.totalorder %s16, 2
    // Predicated region
    $region17: #{tpu_custom_call.1} parent=5 // pred_check
      %p154 = pneg %p153
    $region18: #{tpu_custom_call.1} parent=5 // pred_check_branch
      %156 = sbr.rel (%p154) target = $region20
    $region19: #{tpu_custom_call.1} parent=5 // pred_region
      // Predicated region
      $region21: #{tpu_custom_call.1} parent=19 // pred_check
        %p157 = pneg %p50
      $region22: #{tpu_custom_call.1} parent=19 // pred_check_branch
        %159 = sbr.rel (%p157) target = $region24
      $region23: #{tpu_custom_call.1} parent=19 // pred_region
        %p160 = scmp.lt.s32.totalorder %s24, 1
        %s161 = scalar_select %p160, %s24, 1
        %p162 = scmp.lt.s32.totalorder %s23, 0
        %s163 = scalar_select %p162, %s23, 0
        %s164 = smul.addr %s163, 2
        %s165 = smul.addr %s161, 2
        %s166 = sadd.s32 %s164, %s165
        %s167 = smul.addr %s166, 4
        %s168 = scalar_lea.vmem %s1, %s167
      $region24: #{tpu_custom_call.1} parent=19 // pred_fallthru
        _
      // Predicated region
      $region25: #{tpu_custom_call.1} parent=19 // pred_check
        %p169 = pneg %p101
      $region26: #{tpu_custom_call.1} parent=19 // pred_check_branch
        %171 = sbr.rel (%p169) target = $region28
      $region27: #{tpu_custom_call.1} parent=19 // pred_region
        %s172 = sld [smem:[#allocation3 + %s24]]
        %p173 = scmp.lt.s32.totalorder %s172, 1
        %s174 = scalar_select %p173, %s172, 1
        %p175 = scmp.lt.s32.totalorder %s23, 0
        %s176 = scalar_select %p175, %s23, 0
        %s177 = sadd.s32 %s176, %s174
        %s178 = smul.addr %s177, 4
        %s179 = scalar_lea.vmem %s3, %s178
        %s180 = sld [smem:[#allocation3 + %s24]]
      $region28: #{tpu_custom_call.1} parent=19 // pred_fallthru
        _
    $region20: #{tpu_custom_call.1} parent=5 // pred_fallthru
      _
    %p181 = scmp.le.s32.totalorder 1, %s16
    %p182 = scmp.lt.s32.totalorder %s16, 3
    %p183 = pnand %p181, %p182
    %p184 = pneg %p183
    // Predicated region
    $region29: #{tpu_custom_call.1} parent=5 // pred_check
      _
    $region30: #{tpu_custom_call.1} parent=5 // pred_check_branch
      %186 = sbr.rel (%p183) target = $region32
    $region31: #{tpu_custom_call.1} parent=5 // pred_region
      %s187 = ssub.s32 %s16, 1
      %p188 = scmp.lt.s32.totalorder %s26, 1
      %s189 = scalar_select %p188, %s26, 1
      %p190 = scmp.lt.s32.totalorder %s25, 0
      %s191 = scalar_select %p190, %s25, 0
      %s192 = smul.addr %s191, 2
      %s193 = smul.addr %s189, 2
      %s194 = sadd.s32 %s192, %s193
      %s195 = smul.addr %s194, 4
      %s196 = scalar_lea.vmem %s1, %s195
      %p197 = pneg %p56
      %p198 = pneg %p53
      %p199 = pneg %p77
      %p200 = pneg %p74
      %s201 = sld [smem:[#allocation3 + %s26]]
      %p202 = scmp.lt.s32.totalorder %s201, 1
      %s203 = scalar_select %p202, %s201, 1
      %p204 = scmp.lt.s32.totalorder %s25, 0
      %s205 = scalar_select %p204, %s25, 0
      %s206 = sadd.s32 %s205, %s203
      %s207 = smul.addr %s206, 4
      %s208 = scalar_lea.vmem %s3, %s207
      %p209 = pneg %p107
      %p210 = pneg %p104
      %p211 = pneg %p135
      %p212 = pneg %p132
      %p213 = scmp.lt.s32.totalorder %s26, 1
      %s214 = scalar_select %p213, %s26, 1
      %p215 = scmp.lt.s32.totalorder %s25, 0
      %s216 = scalar_select %p215, %s25, 0
      %s217 = sadd.s32 %s216, %s214
      %s218 = smul.addr %s217, 4
      %s219 = scalar_lea.vmem %s4, %s218
      %p220 = scmp.lt.s32.totalorder %s26, 1
      %s221 = scalar_select %p220, %s26, 1
      %p222 = scmp.lt.s32.totalorder %s25, 0
      %s223 = scalar_select %p222, %s25, 0
      %s224 = smul.addr %s223, 2
      %s225 = smul.addr %s221, 2
      %s226 = sadd.s32 %s224, %s225
      %s227 = smul.addr %s226, 4
      %s228 = scalar_lea.vmem %s1, %s227
      %s229 = sld [smem:[#allocation3 + %s26]]
      %p230 = scmp.lt.s32.totalorder %s229, 1
      %s231 = scalar_select %p230, %s229, 1
      %p232 = scmp.lt.s32.totalorder %s25, 0
      %s233 = scalar_select %p232, %s25, 0
      %s234 = sadd.s32 %s233, %s231
      %s235 = smul.addr %s234, 4
      %s236 = scalar_lea.vmem %s3, %s235
      %s237 = sld [smem:[#allocation3 + %s26]]
      %p238 = scmp.lt.s32.totalorder %s26, 1
      %s239 = scalar_select %p238, %s26, 1
      %p240 = scmp.lt.s32.totalorder %s25, 0
      %s241 = scalar_select %p240, %s25, 0
      %s242 = sadd.s32 %s241, %s239
      %s243 = smul.addr %s242, 4
      %s244 = scalar_lea.vmem %s4, %s243
      %v246 = vld [vmem:[%s228] sm:$0x77]
      %v247 = vld [vmem:[%s2] sm:$0xf]
      %v248 = vld [vmem:[%s2 + $0x4] sm:$0xf]
      %v249 = vld [vmem:[%s2 + $0x8] sm:$0xf]
      %v250 = vld [vmem:[%s2 + $0xc] sm:$0xf]
      %v251 = vld [vmem:[%s2 + $0x10] sm:$0xf]
      %v252 = vld [vmem:[%s2 + $0x14] sm:$0xf]
      %v253 = vld [vmem:[%s2 + $0x18] sm:$0xf]
      %v254 = vld [vmem:[%s2 + $0x1c] sm:$0xf]
      %v255 = vld [vmem:[%s2 + $0x20] sm:$0xf]
      %v256 = vld [vmem:[%s2 + $0x24] sm:$0xf]
      %v257 = vld [vmem:[%s2 + $0x28] sm:$0xf]
      %v258 = vld [vmem:[%s2 + $0x2c] sm:$0xf]
      %v259 = vld [vmem:[%s2 + $0x30] sm:$0xf]
      %v260 = vld [vmem:[%s2 + $0x34] sm:$0xf]
      %v261 = vld [vmem:[%s2 + $0x38] sm:$0xf]
      %v262 = vld [vmem:[%s2 + $0x3c] sm:$0xf]
      %v263 = vld [vmem:[%s2 + $0x40] sm:$0xf]
      %v264 = vld [vmem:[%s2 + $0x44] sm:$0xf]
      %v265 = vld [vmem:[%s2 + $0x48] sm:$0xf]
      %v266 = vld [vmem:[%s2 + $0x4c] sm:$0xf]
      %v267 = vld [vmem:[%s2 + $0x50] sm:$0xf]
      %v268 = vld [vmem:[%s2 + $0x54] sm:$0xf]
      %v269 = vld [vmem:[%s2 + $0x58] sm:$0xf]
      %v270 = vld [vmem:[%s2 + $0x5c] sm:$0xf]
      %v271 = vld [vmem:[%s2 + $0x60] sm:$0xf]
      %v272 = vld [vmem:[%s2 + $0x64] sm:$0xf]
      %v273 = vld [vmem:[%s2 + $0x68] sm:$0xf]
      %v274 = vld [vmem:[%s2 + $0x6c] sm:$0xf]
      %v275 = vld [vmem:[%s2 + $0x70] sm:$0xf]
      %v276 = vld [vmem:[%s2 + $0x74] sm:$0xf]
      %v277 = vld [vmem:[%s2 + $0x78] sm:$0xf]
      %v278 = vld [vmem:[%s2 + $0x7c] sm:$0xf]
      %v279 = vld [vmem:[%s236] sm:$0x7]
      %v280 = vunpack.c.l.bf16 %v279
      %v282 = vunpack.c.l.b16 %v246
      %v283 = vunpack.c.h.b16 %v246
      %v284 = vpack.c.b16 %v282, %v282
      %v285 = vpack.c.b16 %v283, %v283
      %v320 = vunpack.c.l.b16 %v247
      %v321 = vunpack.c.l.b16 %v248
      %v322 = vunpack.c.l.b16 %v249
      %v323 = vunpack.c.l.b16 %v250
      %v324 = vunpack.c.l.b16 %v251
      %v325 = vunpack.c.l.b16 %v252
      %v326 = vunpack.c.l.b16 %v253
      %v327 = vunpack.c.l.b16 %v254
      %v328 = vunpack.c.l.b16 %v255
      %v329 = vunpack.c.l.b16 %v256
      %v330 = vunpack.c.l.b16 %v257
      %v331 = vunpack.c.l.b16 %v258
      %v332 = vunpack.c.l.b16 %v259
      %v333 = vunpack.c.l.b16 %v260
      %v334 = vunpack.c.l.b16 %v261
      %v335 = vunpack.c.l.b16 %v262
      %v336 = vunpack.c.l.b16 %v263
      %v337 = vunpack.c.l.b16 %v264
      %v338 = vunpack.c.l.b16 %v265
      %v339 = vunpack.c.l.b16 %v266
      %v340 = vunpack.c.l.b16 %v267
      %v341 = vunpack.c.l.b16 %v268
      %v342 = vunpack.c.l.b16 %v269
      %v343 = vunpack.c.l.b16 %v270
      %v344 = vunpack.c.l.b16 %v271
      %v345 = vunpack.c.l.b16 %v272
      %v346 = vunpack.c.l.b16 %v273
      %v347 = vunpack.c.l.b16 %v274
      %v348 = vunpack.c.l.b16 %v275
      %v349 = vunpack.c.l.b16 %v276
      %v350 = vunpack.c.l.b16 %v277
      %v351 = vunpack.c.l.b16 %v278
      %v352 = vpack.c.b16 %v321, %v320
      %v353 = vpack.c.b16 %v323, %v322
      %v354 = vpack.c.b16 %v325, %v324
      %v355 = vpack.c.b16 %v327, %v326
      %v356 = vpack.c.b16 %v329, %v328
      %v357 = vpack.c.b16 %v331, %v330
      %v358 = vpack.c.b16 %v333, %v332
      %v359 = vpack.c.b16 %v335, %v334
      %v360 = vpack.c.b16 %v337, %v336
      %v361 = vpack.c.b16 %v339, %v338
      %v362 = vpack.c.b16 %v341, %v340
      %v363 = vpack.c.b16 %v343, %v342
      %v364 = vpack.c.b16 %v345, %v344
      %v365 = vpack.c.b16 %v347, %v346
      %v366 = vpack.c.b16 %v349, %v348
      %v367 = vpack.c.b16 %v351, %v350
      %384 = vmatprep.subr.bf16.mxu0 0
      %385 = vmatpush1.bf16.msra.mxu0 %v359
      %386 = vmatprep.subr.bf16.mxu0 0
      %387 = vmatpush1.bf16.msra.mxu0 %v358
      %388 = vmatprep.subr.bf16.mxu0 0
      %389 = vmatpush1.bf16.msra.mxu0 %v357
      %390 = vmatprep.subr.bf16.mxu0 0
      %391 = vmatpush1.bf16.msra.mxu0 %v356
      %392 = vmatprep.subr.bf16.mxu0 0
      %393 = vmatpush1.bf16.msra.mxu0 %v355
      %394 = vmatprep.subr.bf16.mxu0 0
      %395 = vmatpush1.bf16.msra.mxu0 %v354
      %396 = vmatprep.subr.bf16.mxu0 0
      %397 = vmatpush1.bf16.msra.mxu0 %v353
      %398 = vmatprep.subr.bf16.mxu0 0
      %399 = vmatpush1.bf16.msra.mxu0 %v352
      %400 = vmatprep.subr.bf16.mxu0 0
      %401 = vmatpush2.bf16.msra.mxu0 %v367
      %402 = vmatprep.subr.bf16.mxu0 0
      %403 = vmatpush2.bf16.msra.mxu0 %v366
      %404 = vmatprep.subr.bf16.mxu0 0
      %405 = vmatpush2.bf16.msra.mxu0 %v365
      %406 = vmatprep.subr.bf16.mxu0 0
      %407 = vmatpush2.bf16.msra.mxu0 %v364
      %408 = vmatprep.subr.bf16.mxu0 0
      %409 = vmatpush2.bf16.msra.mxu0 %v363
      %410 = vmatprep.subr.bf16.mxu0 0
      %411 = vmatpush2.bf16.msra.mxu0 %v362
      %412 = vmatprep.subr.bf16.mxu0 0
      %413 = vmatpush2.bf16.msra.mxu0 %v361
      %414 = vmatprep.subr.bf16.mxu0 0
      %415 = vmatpush2.bf16.msra.mxu0 %v360
      %416 = vmatprep.mubr.bf16.mxu0 %v285
      %417 = vmatmul.mubr.bf16.gmra.mxu0 %v284
      %v418 = vpop.f32.mrf.mxu0
      %v419 = vadd.f32 %v280, %v418
      %v420 = vpop.f32.mrf.mxu0
      %v421 = vpop.f32.mrf.mxu0
      %v422 = vpop.f32.mrf.mxu0
      %423 = vdwg.mxu0
      %v424 = vpack.c.bf16 %v419, %v419
      %vm425 = vcmask 256000
      %vm426 = vsmask.f32 2304
      %vm427 = vmand %vm425, %vm426
      %v428 = vld [vmem:[%s244] sm:$0x7]
      %v429 = vsel %vm427, %v424, %v428
      %430 = vst [vmem:[%s244] sm:$0x7] %v429
      %p431 = scmp.lt.s32.totalorder %s26, 1
      %s432 = scalar_select %p431, %s26, 1
      %p433 = scmp.lt.s32.totalorder %s25, 0
      %s434 = scalar_select %p433, %s25, 0
      %s435 = sadd.s32 %s434, %s432
      %s436 = smul.addr %s435, 4
      %s437 = scalar_lea.vmem %s4, %s436
      // Predicated region
      $region33: #{tpu_custom_call.1} parent=31 // pred_check
        %p438 = pneg %p132
      $region34: #{tpu_custom_call.1} parent=31 // pred_check_branch
        %440 = sbr.rel (%p438) target = $region36
      $region35: #{tpu_custom_call.1} parent=31 // pred_region
        _
      $region36: #{tpu_custom_call.1} parent=31 // pred_fallthru
        _
    $region32: #{tpu_custom_call.1} parent=5 // pred_fallthru
      _
    %p441 = scmp.le.s32.totalorder 2, %s16
    // Predicated region
    $region37: #{tpu_custom_call.1} parent=5 // pred_check
      %p442 = pneg %p441
    $region38: #{tpu_custom_call.1} parent=5 // pred_check_branch
      %444 = sbr.rel (%p442) target = $region40
    $region39: #{tpu_custom_call.1} parent=5 // pred_region
      %s445 = ssub.s32 %s16, 2
      // Predicated region
      $region41: #{tpu_custom_call.1} parent=39 // pred_check
        %p446 = pneg %p138
      $region42: #{tpu_custom_call.1} parent=39 // pred_check_branch
        %448 = sbr.rel (%p446) target = $region44
      $region43: #{tpu_custom_call.1} parent=39 // pred_region
        %p449 = scmp.lt.s32.totalorder %s28, 1
        %s450 = scalar_select %p449, %s28, 1
        %p451 = scmp.lt.s32.totalorder %s27, 0
        %s452 = scalar_select %p451, %s27, 0
        %s453 = sadd.s32 %s452, %s450
        %s454 = smul.addr %s453, 4
        %s455 = scalar_lea.vmem %s4, %s454
      $region44: #{tpu_custom_call.1} parent=39 // pred_fallthru
        _
    $region40: #{tpu_custom_call.1} parent=5 // pred_fallthru
      _
  $region6: #{tpu_custom_call.1} parent=0 // loop_footer
    %s20 = sadd.s32 1, %s16
  $region7: #{tpu_custom_call.1} parent=0 // loop_footer_branch
    %15 = sbr.rel target = $region3
  $region8: #{tpu_custom_call.1} parent=0 // loop_exit
    _

</llo_original>
